<compile_context>
chip_gen: v7x
topology: tpu7x:2x2x1
jax: 0.10.0
libtpu: 0.0.40
codegen_flags: <defaults>
</compile_context>

<pallas_src>
import numpy as np

import jax
import jax.numpy as jnp
from jax.experimental import pallas as pl
from jax.experimental.pallas import tpu as pltpu


def make_kernel(k):
    """Mirror of stylegan2.layers.make_kernel (numpy version)."""
    k = np.asarray(k, dtype=np.float32)
    if k.ndim == 1:
        k = np.outer(k, k)
    return k / k.sum()


def _downfir_matrix(length, k1d_flip, factor, pad0, pad1):
    """Dense (out_len, length) matrix implementing zero-pad + FIR + stride-`factor`
    subsample along one axis (with the already-flipped, per-axis-normalized taps)."""
    klen = k1d_flip.shape[0]
    out_len = (length + pad0 + pad1 - klen) // factor + 1
    d = np.zeros((out_len, length), dtype=np.float32)
    for o in range(out_len):
        for i in range(klen):
            src = o * factor + i - pad0
            if 0 <= src < length:
                d[o, src] += k1d_flip[i]
    return d


def _downsample_kernel(x_ref, dh_ref, dwt_ref, o_ref):
    # x_ref  : (b_tile, H, W)        block of images (depthwise: N*C fused)
    # dh_ref : (out_h, H)            vertical   FIR + downsample matrix
    # dwt_ref: (W, out_w)            horizontal FIR + downsample matrix (transposed)
    # o_ref  : (b_tile, out_h, out_w)
    dh = dh_ref[...].astype(jnp.float32)
    dwt = dwt_ref[...].astype(jnp.float32)
    b_tile = x_ref.shape[0]

    def body(i, carry):
        xi = x_ref[i].astype(jnp.float32)                         # (H, W)
        a = jnp.dot(dh, xi, preferred_element_type=jnp.float32)   # (out_h, W)
        y = jnp.dot(a, dwt, preferred_element_type=jnp.float32)   # (out_h, out_w)
        o_ref[i] = y.astype(o_ref.dtype)
        return carry

    # b_tile is static; unroll short loops so the LLO scheduler sees everything.
    jax.lax.fori_loop(0, b_tile, body, 0, unroll=b_tile <= 16)


def downsample_pallas(x3, dh, dwt, *, b_tile=None, vmem_budget_bytes=4 * 1024 * 1024):
    """x3: (N*C, H, W), dh: (out_h, H), dwt: (W, out_w) -> (N*C, out_h, out_w)."""
    NC, H, W = x3.shape
    out_h = dh.shape[0]
    out_w = dwt.shape[1]

    if b_tile is None:
        # Size the image block against a conservative VMEM budget (double
        # buffering of x and out blocks stays well under the 16 MiB v5e /
        # 32 MiB v6e-v7x default scoped-VMEM limits).
        bytes_per_img = (H * W + out_h * out_w) * x3.dtype.itemsize
        b_tile = int(max(1, min(NC, vmem_budget_bytes // bytes_per_img, 64)))

    grid = (pl.cdiv(NC, b_tile),)

    flops = int(NC * (2 * out_h * H * W + 2 * out_h * out_w * W))
    bytes_accessed = int(
        NC * (H * W + out_h * out_w) * x3.dtype.itemsize
        + (out_h * H + W * out_w) * 4
    )

    return pl.pallas_call(
        _downsample_kernel,
        out_shape=jax.ShapeDtypeStruct((NC, out_h, out_w), x3.dtype),
        grid_spec=pltpu.PrefetchScalarGridSpec(
            num_scalar_prefetch=0,
            grid=grid,
            in_specs=[
                pl.BlockSpec((b_tile, H, W), lambda i: (i, 0, 0)),
                pl.BlockSpec((out_h, H), lambda i: (0, 0)),
                pl.BlockSpec((W, out_w), lambda i: (0, 0)),
            ],
            out_specs=pl.BlockSpec((b_tile, out_h, out_w), lambda i: (i, 0, 0)),
        ),
        compiler_params=pltpu.CompilerParams(
            dimension_semantics=("parallel",),
        ),
        cost_estimate=pl.CostEstimate(
            flops=flops, transcendentals=0, bytes_accessed=bytes_accessed
        ),
    )(x3, dh, dwt)


class Downsample:
    """JAX/Pallas port of stylegan2.layers.Downsample (blur + stride-`factor`)."""

    def __init__(self, kernel, factor=2):
        k1 = np.asarray(kernel, dtype=np.float32)
        # TODO(synk): only separable (1-D) blur kernels are handled; StyleGAN2's
        # Downsample is always constructed with a 1-D kernel (e.g. [1, 3, 3, 1]).
        assert k1.ndim == 1, "Downsample expects a 1-D blur kernel, e.g. [1, 3, 3, 1]"
        self.factor = int(factor)
        # Registered-buffer equivalent: the normalized 2-D kernel (for reference).
        self.kernel = jnp.asarray(make_kernel(k1))
        p = k1.shape[0] - self.factor
        self.pad = ((p + 1) // 2, p // 2)
        # Per-axis normalized + flipped taps (upfirdn2d does a true convolution).
        self._k1d_flip = np.ascontiguousarray((k1 / k1.sum())[::-1])
        self._fir_cache = {}

    def _fir_matrix(self, length):
        key = int(length)
        if key not in self._fir_cache:
            self._fir_cache[key] = _downfir_matrix(
                length, self._k1d_flip, self.factor, self.pad[0], self.pad[1]
            )
        return self._fir_cache[key]

    def __call__(self, x):
        # x: (N, C, H, W) NCHW, as in PyTorch.  No layout transposes needed.
        N, C, H, W = x.shape
        dh = self._fir_matrix(H)           # (out_h, H)
        dw = self._fir_matrix(W)           # (out_w, W)
        out_h, out_w = dh.shape[0], dw.shape[0]

        x3 = x.reshape(N * C, H, W)        # free reshape (contiguous merge)
        y3 = downsample_pallas(x3, jnp.asarray(dh), jnp.asarray(dw.T))
        return y3.reshape(N, C, out_h, out_w)


if __name__ == "__main__":
    key = jax.random.PRNGKey(0)
    N, C, H, W = 2, 4, 16, 16
    x = jax.random.normal(key, (N, C, H, W), dtype=jnp.float32)

    layer = Downsample([1, 3, 3, 1], factor=2)
    y = layer(x)
    y = jax.block_until_ready(y)

    # Pure-JAX reference: upfirdn2d(up=1, down=factor, pad=pad) ==
    # zero-pad + cross-correlation with the flipped normalized 2-D kernel
    # (depthwise) + stride-`factor` subsample.
    p0, p1 = layer.pad
    k2d = layer.kernel
    xpad = jnp.pad(x, ((0, 0), (0, 0), (p0, p1), (p0, p1)))
    w = jnp.tile(jnp.flip(k2d, (0, 1))[None, None], (C, 1, 1, 1))   # (C,1,kh,kw)
    ref = jax.lax.conv_general_dilated(
        xpad, w,
        window_strides=(layer.factor, layer.factor),
        padding="VALID",
        dimension_numbers=("NCHW", "OIHW", "NCHW"),
        feature_group_count=C,
    )

    assert y.shape == (N, C, H // layer.factor, W // layer.factor), y.shape
    assert y.shape == ref.shape, (y.shape, ref.shape)
    assert jnp.allclose(y, ref, atol=1e-5, rtol=1e-5), float(jnp.max(jnp.abs(y - ref)))

    print("KERNEL_OK")
</pallas_src>

<mosaic_0001>
module attributes {stable_mosaic.version = 11 : i64} {
  func.func @_downsample_kernel(%arg0: i32, %arg1: memref<8x16x16xf32, #tpu.memory_space<vmem>>, %arg2: memref<8x16xf32, #tpu.memory_space<vmem>>, %arg3: memref<16x8xf32, #tpu.memory_space<vmem>>, %arg4: memref<8x8x8xf32, #tpu.memory_space<vmem>>) attributes {dimension_semantics = [#tpu.dimension_semantics<parallel>], iteration_bounds = array<i64: 1>, scalar_prefetch = 0 : i64, scratch_operands = 0 : i64, tpu.core_type = #tpu.core_type<tc>, window_params = [{transform_indices = @transform_0, window_bounds = array<i64: 8, 16, 16>}, {pipeline_mode = #tpu.pipeline_mode<synchronous>, transform_indices = @transform_1, window_bounds = array<i64: 8, 16>}, {pipeline_mode = #tpu.pipeline_mode<synchronous>, transform_indices = @transform_2, window_bounds = array<i64: 16, 8>}, {transform_indices = @transform_3, window_bounds = array<i64: 8, 8, 8>}]} {
    %c0 = arith.constant 0 : index
    %c0_0 = arith.constant 0 : index
    %0 = vector.load %arg2[%c0, %c0_0] : memref<8x16xf32, #tpu.memory_space<vmem>>, vector<8x16xf32>
    %c0_1 = arith.constant 0 : index
    %c0_2 = arith.constant 0 : index
    %1 = vector.load %arg3[%c0_1, %c0_2] : memref<16x8xf32, #tpu.memory_space<vmem>>, vector<16x8xf32>
    %c0_i32 = arith.constant 0 : i32
    %2 = arith.index_cast %c0_i32 : i32 to index
    %c0_3 = arith.constant 0 : index
    %c0_4 = arith.constant 0 : index
    %3 = vector.load %arg1[%2, %c0_3, %c0_4] : memref<8x16x16xf32, #tpu.memory_space<vmem>>, vector<1x16x16xf32>
    %4 = vector.shape_cast %3 : vector<1x16x16xf32> to vector<16x16xf32>
    %cst = arith.constant dense<0.000000e+00> : vector<8x16xf32>
    %5 = tpu.matmul %0, %4, %cst {dimension_numbers = #tpu.dot_dimension_numbers<[1], [0], [0], [1], [0, 0, 1, 1], [], []>} : vector<8x16xf32>, vector<16x16xf32>, vector<8x16xf32> -> vector<8x16xf32>
    %cst_5 = arith.constant dense<0.000000e+00> : vector<8x8xf32>
    %6 = tpu.matmul %5, %1, %cst_5 {dimension_numbers = #tpu.dot_dimension_numbers<[1], [0], [0], [1], [0, 0, 1, 1], [], []>} : vector<8x16xf32>, vector<16x8xf32>, vector<8x8xf32> -> vector<8x8xf32>
    %7 = arith.index_cast %c0_i32 : i32 to index
    %c0_6 = arith.constant 0 : index
    %c0_7 = arith.constant 0 : index
    %8 = vector.load %arg4[%7, %c0_6, %c0_7] : memref<8x8x8xf32, #tpu.memory_space<vmem>>, vector<1x8x8xf32>
    %9 = vector.shape_cast %8 : vector<1x8x8xf32> to vector<8x8xf32>
    %10 = vector.shape_cast %6 : vector<8x8xf32> to vector<1x8x8xf32>
    tpu.vector_store %arg4[%7, %c0_6, %c0_7], %10 {strides = array<i32>} : memref<8x8x8xf32, #tpu.memory_space<vmem>>, vector<1x8x8xf32>,
    %c1_i32 = arith.constant 1 : i32
    %11 = arith.index_cast %c1_i32 : i32 to index
    %c0_8 = arith.constant 0 : index
    %c0_9 = arith.constant 0 : index
    %12 = vector.load %arg1[%11, %c0_8, %c0_9] : memref<8x16x16xf32, #tpu.memory_space<vmem>>, vector<1x16x16xf32>
    %13 = vector.shape_cast %12 : vector<1x16x16xf32> to vector<16x16xf32>
    %cst_10 = arith.constant dense<0.000000e+00> : vector<8x16xf32>
    %14 = tpu.matmul %0, %13, %cst_10 {dimension_numbers = #tpu.dot_dimension_numbers<[1], [0], [0], [1], [0, 0, 1, 1], [], []>} : vector<8x16xf32>, vector<16x16xf32>, vector<8x16xf32> -> vector<8x16xf32>
    %cst_11 = arith.constant dense<0.000000e+00> : vector<8x8xf32>
    %15 = tpu.matmul %14, %1, %cst_11 {dimension_numbers = #tpu.dot_dimension_numbers<[1], [0], [0], [1], [0, 0, 1, 1], [], []>} : vector<8x16xf32>, vector<16x8xf32>, vector<8x8xf32> -> vector<8x8xf32>
    %16 = arith.index_cast %c1_i32 : i32 to index
    %c0_12 = arith.constant 0 : index
    %c0_13 = arith.constant 0 : index
    %17 = vector.load %arg4[%16, %c0_12, %c0_13] : memref<8x8x8xf32, #tpu.memory_space<vmem>>, vector<1x8x8xf32>
    %18 = vector.shape_cast %17 : vector<1x8x8xf32> to vector<8x8xf32>
    %19 = vector.shape_cast %15 : vector<8x8xf32> to vector<1x8x8xf32>
    tpu.vector_store %arg4[%16, %c0_12, %c0_13], %19 {strides = array<i32>} : memref<8x8x8xf32, #tpu.memory_space<vmem>>, vector<1x8x8xf32>,
    %c2_i32 = arith.constant 2 : i32
    %20 = arith.index_cast %c2_i32 : i32 to index
    %c0_14 = arith.constant 0 : index
    %c0_15 = arith.constant 0 : index
    %21 = vector.load %arg1[%20, %c0_14, %c0_15] : memref<8x16x16xf32, #tpu.memory_space<vmem>>, vector<1x16x16xf32>
    %22 = vector.shape_cast %21 : vector<1x16x16xf32> to vector<16x16xf32>
    %cst_16 = arith.constant dense<0.000000e+00> : vector<8x16xf32>
    %23 = tpu.matmul %0, %22, %cst_16 {dimension_numbers = #tpu.dot_dimension_numbers<[1], [0], [0], [1], [0, 0, 1, 1], [], []>} : vector<8x16xf32>, vector<16x16xf32>, vector<8x16xf32> -> vector<8x16xf32>
    %cst_17 = arith.constant dense<0.000000e+00> : vector<8x8xf32>
    %24 = tpu.matmul %23, %1, %cst_17 {dimension_numbers = #tpu.dot_dimension_numbers<[1], [0], [0], [1], [0, 0, 1, 1], [], []>} : vector<8x16xf32>, vector<16x8xf32>, vector<8x8xf32> -> vector<8x8xf32>
    %25 = arith.index_cast %c2_i32 : i32 to index
    %c0_18 = arith.constant 0 : index
    %c0_19 = arith.constant 0 : index
    %26 = vector.load %arg4[%25, %c0_18, %c0_19] : memref<8x8x8xf32, #tpu.memory_space<vmem>>, vector<1x8x8xf32>
    %27 = vector.shape_cast %26 : vector<1x8x8xf32> to vector<8x8xf32>
    %28 = vector.shape_cast %24 : vector<8x8xf32> to vector<1x8x8xf32>
    tpu.vector_store %arg4[%25, %c0_18, %c0_19], %28 {strides = array<i32>} : memref<8x8x8xf32, #tpu.memory_space<vmem>>, vector<1x8x8xf32>,
    %c3_i32 = arith.constant 3 : i32
    %29 = arith.index_cast %c3_i32 : i32 to index
    %c0_20 = arith.constant 0 : index
    %c0_21 = arith.constant 0 : index
    %30 = vector.load %arg1[%29, %c0_20, %c0_21] : memref<8x16x16xf32, #tpu.memory_space<vmem>>, vector<1x16x16xf32>
    %31 = vector.shape_cast %30 : vector<1x16x16xf32> to vector<16x16xf32>
    %cst_22 = arith.constant dense<0.000000e+00> : vector<8x16xf32>
    %32 = tpu.matmul %0, %31, %cst_22 {dimension_numbers = #tpu.dot_dimension_numbers<[1], [0], [0], [1], [0, 0, 1, 1], [], []>} : vector<8x16xf32>, vector<16x16xf32>, vector<8x16xf32> -> vector<8x16xf32>
    %cst_23 = arith.constant dense<0.000000e+00> : vector<8x8xf32>
    %33 = tpu.matmul %32, %1, %cst_23 {dimension_numbers = #tpu.dot_dimension_numbers<[1], [0], [0], [1], [0, 0, 1, 1], [], []>} : vector<8x16xf32>, vector<16x8xf32>, vector<8x8xf32> -> vector<8x8xf32>
    %34 = arith.index_cast %c3_i32 : i32 to index
    %c0_24 = arith.constant 0 : index
    %c0_25 = arith.constant 0 : index
    %35 = vector.load %arg4[%34, %c0_24, %c0_25] : memref<8x8x8xf32, #tpu.memory_space<vmem>>, vector<1x8x8xf32>
    %36 = vector.shape_cast %35 : vector<1x8x8xf32> to vector<8x8xf32>
    %37 = vector.shape_cast %33 : vector<8x8xf32> to vector<1x8x8xf32>
    tpu.vector_store %arg4[%34, %c0_24, %c0_25], %37 {strides = array<i32>} : memref<8x8x8xf32, #tpu.memory_space<vmem>>, vector<1x8x8xf32>,
    %c4_i32 = arith.constant 4 : i32
    %38 = arith.index_cast %c4_i32 : i32 to index
    %c0_26 = arith.constant 0 : index
    %c0_27 = arith.constant 0 : index
    %39 = vector.load %arg1[%38, %c0_26, %c0_27] : memref<8x16x16xf32, #tpu.memory_space<vmem>>, vector<1x16x16xf32>
    %40 = vector.shape_cast %39 : vector<1x16x16xf32> to vector<16x16xf32>
    %cst_28 = arith.constant dense<0.000000e+00> : vector<8x16xf32>
    %41 = tpu.matmul %0, %40, %cst_28 {dimension_numbers = #tpu.dot_dimension_numbers<[1], [0], [0], [1], [0, 0, 1, 1], [], []>} : vector<8x16xf32>, vector<16x16xf32>, vector<8x16xf32> -> vector<8x16xf32>
    %cst_29 = arith.constant dense<0.000000e+00> : vector<8x8xf32>
    %42 = tpu.matmul %41, %1, %cst_29 {dimension_numbers = #tpu.dot_dimension_numbers<[1], [0], [0], [1], [0, 0, 1, 1], [], []>} : vector<8x16xf32>, vector<16x8xf32>, vector<8x8xf32> -> vector<8x8xf32>
    %43 = arith.index_cast %c4_i32 : i32 to index
    %c0_30 = arith.constant 0 : index
    %c0_31 = arith.constant 0 : index
    %44 = vector.load %arg4[%43, %c0_30, %c0_31] : memref<8x8x8xf32, #tpu.memory_space<vmem>>, vector<1x8x8xf32>
    %45 = vector.shape_cast %44 : vector<1x8x8xf32> to vector<8x8xf32>
    %46 = vector.shape_cast %42 : vector<8x8xf32> to vector<1x8x8xf32>
    tpu.vector_store %arg4[%43, %c0_30, %c0_31], %46 {strides = array<i32>} : memref<8x8x8xf32, #tpu.memory_space<vmem>>, vector<1x8x8xf32>,
    %c5_i32 = arith.constant 5 : i32
    %47 = arith.index_cast %c5_i32 : i32 to index
    %c0_32 = arith.constant 0 : index
    %c0_33 = arith.constant 0 : index
    %48 = vector.load %arg1[%47, %c0_32, %c0_33] : memref<8x16x16xf32, #tpu.memory_space<vmem>>, vector<1x16x16xf32>
    %49 = vector.shape_cast %48 : vector<1x16x16xf32> to vector<16x16xf32>
    %cst_34 = arith.constant dense<0.000000e+00> : vector<8x16xf32>
    %50 = tpu.matmul %0, %49, %cst_34 {dimension_numbers = #tpu.dot_dimension_numbers<[1], [0], [0], [1], [0, 0, 1, 1], [], []>} : vector<8x16xf32>, vector<16x16xf32>, vector<8x16xf32> -> vector<8x16xf32>
    %cst_35 = arith.constant dense<0.000000e+00> : vector<8x8xf32>
    %51 = tpu.matmul %50, %1, %cst_35 {dimension_numbers = #tpu.dot_dimension_numbers<[1], [0], [0], [1], [0, 0, 1, 1], [], []>} : vector<8x16xf32>, vector<16x8xf32>, vector<8x8xf32> -> vector<8x8xf32>
    %52 = arith.index_cast %c5_i32 : i32 to index
    %c0_36 = arith.constant 0 : index
    %c0_37 = arith.constant 0 : index
    %53 = vector.load %arg4[%52, %c0_36, %c0_37] : memref<8x8x8xf32, #tpu.memory_space<vmem>>, vector<1x8x8xf32>
    %54 = vector.shape_cast %53 : vector<1x8x8xf32> to vector<8x8xf32>
    %55 = vector.shape_cast %51 : vector<8x8xf32> to vector<1x8x8xf32>
    tpu.vector_store %arg4[%52, %c0_36, %c0_37], %55 {strides = array<i32>} : memref<8x8x8xf32, #tpu.memory_space<vmem>>, vector<1x8x8xf32>,
    %c6_i32 = arith.constant 6 : i32
    %56 = arith.index_cast %c6_i32 : i32 to index
    %c0_38 = arith.constant 0 : index
    %c0_39 = arith.constant 0 : index
    %57 = vector.load %arg1[%56, %c0_38, %c0_39] : memref<8x16x16xf32, #tpu.memory_space<vmem>>, vector<1x16x16xf32>
    %58 = vector.shape_cast %57 : vector<1x16x16xf32> to vector<16x16xf32>
    %cst_40 = arith.constant dense<0.000000e+00> : vector<8x16xf32>
    %59 = tpu.matmul %0, %58, %cst_40 {dimension_numbers = #tpu.dot_dimension_numbers<[1], [0], [0], [1], [0, 0, 1, 1], [], []>} : vector<8x16xf32>, vector<16x16xf32>, vector<8x16xf32> -> vector<8x16xf32>
    %cst_41 = arith.constant dense<0.000000e+00> : vector<8x8xf32>
    %60 = tpu.matmul %59, %1, %cst_41 {dimension_numbers = #tpu.dot_dimension_numbers<[1], [0], [0], [1], [0, 0, 1, 1], [], []>} : vector<8x16xf32>, vector<16x8xf32>, vector<8x8xf32> -> vector<8x8xf32>
    %61 = arith.index_cast %c6_i32 : i32 to index
    %c0_42 = arith.constant 0 : index
    %c0_43 = arith.constant 0 : index
    %62 = vector.load %arg4[%61, %c0_42, %c0_43] : memref<8x8x8xf32, #tpu.memory_space<vmem>>, vector<1x8x8xf32>
    %63 = vector.shape_cast %62 : vector<1x8x8xf32> to vector<8x8xf32>
    %64 = vector.shape_cast %60 : vector<8x8xf32> to vector<1x8x8xf32>
    tpu.vector_store %arg4[%61, %c0_42, %c0_43], %64 {strides = array<i32>} : memref<8x8x8xf32, #tpu.memory_space<vmem>>, vector<1x8x8xf32>,
    %c7_i32 = arith.constant 7 : i32
    %65 = arith.index_cast %c7_i32 : i32 to index
    %c0_44 = arith.constant 0 : index
    %c0_45 = arith.constant 0 : index
    %66 = vector.load %arg1[%65, %c0_44, %c0_45] : memref<8x16x16xf32, #tpu.memory_space<vmem>>, vector<1x16x16xf32>
    %67 = vector.shape_cast %66 : vector<1x16x16xf32> to vector<16x16xf32>
    %cst_46 = arith.constant dense<0.000000e+00> : vector<8x16xf32>
    %68 = tpu.matmul %0, %67, %cst_46 {dimension_numbers = #tpu.dot_dimension_numbers<[1], [0], [0], [1], [0, 0, 1, 1], [], []>} : vector<8x16xf32>, vector<16x16xf32>, vector<8x16xf32> -> vector<8x16xf32>
    %cst_47 = arith.constant dense<0.000000e+00> : vector<8x8xf32>
    %69 = tpu.matmul %68, %1, %cst_47 {dimension_numbers = #tpu.dot_dimension_numbers<[1], [0], [0], [1], [0, 0, 1, 1], [], []>} : vector<8x16xf32>, vector<16x8xf32>, vector<8x8xf32> -> vector<8x8xf32>
    %70 = arith.index_cast %c7_i32 : i32 to index
    %c0_48 = arith.constant 0 : index
    %c0_49 = arith.constant 0 : index
    %71 = vector.load %arg4[%70, %c0_48, %c0_49] : memref<8x8x8xf32, #tpu.memory_space<vmem>>, vector<1x8x8xf32>
    %72 = vector.shape_cast %71 : vector<1x8x8xf32> to vector<8x8xf32>
    %73 = vector.shape_cast %69 : vector<8x8xf32> to vector<1x8x8xf32>
    tpu.vector_store %arg4[%70, %c0_48, %c0_49], %73 {strides = array<i32>} : memref<8x8x8xf32, #tpu.memory_space<vmem>>, vector<1x8x8xf32>,
    %c8_i32 = arith.constant 8 : i32
    return
  }
  func.func @transform_0(%arg0: i32) -> (i32, i32, i32) {
    %c0_i32 = arith.constant 0 : i32
    %c0_i32_0 = arith.constant 0 : i32
    %c0_i32_1 = arith.constant 0 : i32
    return %arg0, %c0_i32, %c0_i32_0 : i32, i32, i32
  }
  func.func @transform_1(%arg0: i32) -> (i32, i32) {
    %c0_i32 = arith.constant 0 : i32
    %c0_i32_0 = arith.constant 0 : i32
    %c0_i32_1 = arith.constant 0 : i32
    return %c0_i32, %c0_i32_0 : i32, i32
  }
  func.func @transform_2(%arg0: i32) -> (i32, i32) {
    %c0_i32 = arith.constant 0 : i32
    %c0_i32_0 = arith.constant 0 : i32
    %c0_i32_1 = arith.constant 0 : i32
    return %c0_i32, %c0_i32_0 : i32, i32
  }
  func.func @transform_3(%arg0: i32) -> (i32, i32, i32) {
    %c0_i32 = arith.constant 0 : i32
    %c0_i32_0 = arith.constant 0 : i32
    %c0_i32_1 = arith.constant 0 : i32
    return %arg0, %c0_i32, %c0_i32_0 : i32, i32, i32
  }
}

</mosaic_0001>

<llo_original>
// kernel: tpu_custom_call.1
$region0: #{tpu_custom_call.1}
  #allocation0 [shape = 'u32[]', space=smem, size = 0x4, offset = 0x4, fixed_abs, tag = 'smem constant byte address 0x4 - core index']
  #allocation1 [shape = 'u32[144,128]{1,0:T(1,128)}', space=vmem, size = 0x12000, scoped, tag = 'internal scratch']
  %s0 = inlined_call_operand.hbm [shape: f32[8,16,16], index: 0, kind: input, shape index: {}]
  %s1 = inlined_call_operand.vmem [shape: f32[8,16], index: 1, kind: input, shape index: {}]
  %s2 = inlined_call_operand.vmem [shape: f32[16,8], index: 2, kind: input, shape index: {}]
  %s3 = inlined_call_operand.hbm [shape: f32[8,8,8], index: 3, kind: output, shape index: {}]
  %s4 = sld [smem:[#allocation0]]
  $region26: #{tpu_custom_call.1} parent=0
    _
  %s6 = ssub.s32 1, %s4
  %s7 = scalar_select 0, %s6, %s4
  $region1: #{tpu_custom_call.1} parent=0
    #allocation2 [shape = 'u8[65536]{0}', space=vmem, size = 0x10000, scoped, tag = 'input window, operand 0, single buffered']
    #allocation3 [shape = 's32[1]{0}', space=sflag, size = 0x4, scoped, tag = 'scoped memory for tpu_custom_call.1']
    #allocation4 [shape = 's32[1]{0}', space=sflag, size = 0x4, scoped, tag = 'scoped memory for tpu_custom_call.1']
    #allocation5 [shape = 'u8[32768]{0}', space=vmem, size = 0x8000, scoped, tag = 'output window, operand 0, single buffered']
    %8 = vsyncpa [#allocation3], 0
    %9 = vsyncpa [#allocation4], 0
    // Predicated region
    $region2: #{tpu_custom_call.1} parent=1 // pred_check
      _
    $region3: #{tpu_custom_call.1} parent=1 // pred_check_branch
      %11 = sbr.rel (0) target = $region5
    $region4: #{tpu_custom_call.1} parent=1 // pred_region
      %s13 = ssub.s32 2048, 2048
      %14 = vsyncadd [#allocation3], %s13
      %s15 = sshll.u32 [#allocation2], 4
      %s16 = int_to_ptr.vmem [resolvable:$true] %s15
      %21 = dma.hbm_to_vmem [thread:$0]  %s0, 2048, %s16, [#allocation3], 128, 128, 8
    $region5: #{tpu_custom_call.1} parent=1 // pred_fallthru
      _
    // Predicated region
    $region6: #{tpu_custom_call.1} parent=1 // pred_check
      _
    $region7: #{tpu_custom_call.1} parent=1 // pred_check_branch
      %23 = sbr.rel (0) target = $region9
    $region8: #{tpu_custom_call.1} parent=1 // pred_region
      _
    $region9: #{tpu_custom_call.1} parent=1 // pred_fallthru
      _
    // Predicated region
    $region10: #{tpu_custom_call.1} parent=1 // pred_check
      _
    $region11: #{tpu_custom_call.1} parent=1 // pred_check_branch
      %25 = sbr.rel (0) target = $region13
    $region12: #{tpu_custom_call.1} parent=1 // pred_region
      _
    $region13: #{tpu_custom_call.1} parent=1 // pred_fallthru
      _
    // Predicated region
    $region14: #{tpu_custom_call.1} parent=1 // pred_check
      _
    $region15: #{tpu_custom_call.1} parent=1 // pred_check_branch
      %27 = sbr.rel (0) target = $region17
    $region16: #{tpu_custom_call.1} parent=1 // pred_region
      %28 = dma.done [#allocation3], 2048
    $region17: #{tpu_custom_call.1} parent=1 // pred_fallthru
      _
    %v29 = vld [vmem:[%s1] sm:$0xff]
    %v30 = vld [vmem:[%s2] sm:$0xff]
    %v31 = vld [vmem:[%s2 + $0x8] sm:$0xff]
    %v32 = vld [vmem:[#allocation2] sm:$0xff]
    %v33 = vld [vmem:[#allocation2 + $0x8] sm:$0xff]
    %vm34 = vcmask 130048
    %v36 = vsel %vm34, %v29, 0
    %38 = vmatprep.subr.mxu0 0.0
    %39 = vmatpush1.msra.mxu0 %v32
    %40 = vmatprep.subr.mxu0 0.0
    %41 = vmatpush1.msra.mxu0 %v33
    %42 = vmatprep.subr.mxu0 0.0
    %43 = vmatpush1.msra.mxu0 0.0
    %44 = vmatprep.subr.mxu0 0.0
    %45 = vmatpush1.msra.mxu0 0.0
    %46 = vmatprep.subr.mxu0 0.0
    %47 = vmatpush1.msra.mxu0 0.0
    %48 = vmatprep.subr.mxu0 0.0
    %49 = vmatpush1.msra.mxu0 0.0
    %50 = vmatprep.subr.mxu0 0.0
    %51 = vmatpush1.msra.mxu0 0.0
    %52 = vmatprep.subr.mxu0 0.0
    %53 = vmatpush1.msra.mxu0 0.0
    %54 = vmatprep.subr.mxu0 0.0
    %55 = vmatpush1.msra.mxu0 0.0
    %56 = vmatprep.subr.mxu0 0.0
    %57 = vmatpush1.msra.mxu0 0.0
    %58 = vmatprep.subr.mxu0 0.0
    %59 = vmatpush1.msra.mxu0 0.0
    %60 = vmatprep.subr.mxu0 0.0
    %61 = vmatpush1.msra.mxu0 0.0
    %62 = vmatprep.subr.mxu0 0.0
    %63 = vmatpush1.msra.mxu0 0.0
    %64 = vmatprep.subr.mxu0 0.0
    %65 = vmatpush1.msra.mxu0 0.0
    %66 = vmatprep.subr.mxu0 0.0
    %67 = vmatpush1.msra.mxu0 0.0
    %68 = vmatprep.subr.mxu0 0.0
    %69 = vmatpush1.msra.mxu0 0.0
    %70 = vmatprep.subr.mxu0 0.0
    %71 = vmatpush1.msra.mxu0 0.0
    %72 = vmatprep.subr.mxu0 0.0
    %73 = vmatpush1.msra.mxu0 0.0
    %74 = vmatprep.subr.mxu0 0.0
    %75 = vmatpush1.msra.mxu0 0.0
    %76 = vmatprep.subr.mxu0 0.0
    %77 = vmatpush1.msra.mxu0 0.0
    %78 = vmatprep.subr.mxu0 0.0
    %79 = vmatpush1.msra.mxu0 0.0
    %80 = vmatprep.subr.mxu0 0.0
    %81 = vmatpush1.msra.mxu0 0.0
    %82 = vmatprep.subr.mxu0 0.0
    %83 = vmatpush1.msra.mxu0 0.0
    %84 = vmatprep.subr.mxu0 0.0
    %85 = vmatpush1.msra.mxu0 0.0
    %86 = vmatprep.subr.mxu0 0.0
    %87 = vmatpush1.msra.mxu0 0.0
    %88 = vmatprep.subr.mxu0 0.0
    %89 = vmatpush1.msra.mxu0 0.0
    %90 = vmatprep.subr.mxu0 0.0
    %91 = vmatpush1.msra.mxu0 0.0
    %92 = vmatprep.subr.mxu0 0.0
    %93 = vmatpush1.msra.mxu0 0.0
    %94 = vmatprep.subr.mxu0 0.0
    %95 = vmatpush1.msra.mxu0 0.0
    %96 = vmatprep.subr.mxu0 0.0
    %97 = vmatpush1.msra.mxu0 0.0
    %98 = vmatprep.subr.mxu0 0.0
    %99 = vmatpush1.msra.mxu0 0.0
    %100 = vmatprep.subr.mxu0 0.0
    %101 = vmatpush1.msra.mxu0 0.0
    %102 = vmatprep.mubr.f32.mxu0 0.0
    %103 = vmatmul.mubr.f32.gmra.mrb[0].mxu0 %v36
    %v104 = vpop.f32.mrb[0].mxu0
    %v105 = vadd.f32 0.0, %v104
    %v106 = vpop.f32.mrb[0].mxu0
    %107 = vdwg.mxu0
    %v109 = vsel %vm34, %v105, 0
    %111 = vmatprep.subr.mxu0 0.0
    %112 = vmatpush1.msra.mxu0 %v30
    %113 = vmatprep.subr.mxu0 0.0
    %114 = vmatpush1.msra.mxu0 %v31
    %115 = vmatprep.subr.mxu0 0.0
    %116 = vmatpush1.msra.mxu0 0.0
    %117 = vmatprep.subr.mxu0 0.0
    %118 = vmatpush1.msra.mxu0 0.0
    %119 = vmatprep.subr.mxu0 0.0
    %120 = vmatpush1.msra.mxu0 0.0
    %121 = vmatprep.subr.mxu0 0.0
    %122 = vmatpush1.msra.mxu0 0.0
    %123 = vmatprep.subr.mxu0 0.0
    %124 = vmatpush1.msra.mxu0 0.0
    %125 = vmatprep.subr.mxu0 0.0
    %126 = vmatpush1.msra.mxu0 0.0
    %127 = vmatprep.subr.mxu0 0.0
    %128 = vmatpush1.msra.mxu0 0.0
    %129 = vmatprep.subr.mxu0 0.0
    %130 = vmatpush1.msra.mxu0 0.0
    %131 = vmatprep.subr.mxu0 0.0
    %132 = vmatpush1.msra.mxu0 0.0
    %133 = vmatprep.subr.mxu0 0.0
    %134 = vmatpush1.msra.mxu0 0.0
    %135 = vmatprep.subr.mxu0 0.0
    %136 = vmatpush1.msra.mxu0 0.0
    %137 = vmatprep.subr.mxu0 0.0
    %138 = vmatpush1.msra.mxu0 0.0
    %139 = vmatprep.subr.mxu0 0.0
    %140 = vmatpush1.msra.mxu0 0.0
    %141 = vmatprep.subr.mxu0 0.0
    %142 = vmatpush1.msra.mxu0 0.0
    %143 = vmatprep.subr.mxu0 0.0
    %144 = vmatpush1.msra.mxu0 0.0
    %145 = vmatprep.subr.mxu0 0.0
    %146 = vmatpush1.msra.mxu0 0.0
    %147 = vmatprep.subr.mxu0 0.0
    %148 = vmatpush1.msra.mxu0 0.0
    %149 = vmatprep.subr.mxu0 0.0
    %150 = vmatpush1.msra.mxu0 0.0
    %151 = vmatprep.subr.mxu0 0.0
    %152 = vmatpush1.msra.mxu0 0.0
    %153 = vmatprep.subr.mxu0 0.0
    %154 = vmatpush1.msra.mxu0 0.0
    %155 = vmatprep.subr.mxu0 0.0
    %156 = vmatpush1.msra.mxu0 0.0
    %157 = vmatprep.subr.mxu0 0.0
    %158 = vmatpush1.msra.mxu0 0.0
    %159 = vmatprep.subr.mxu0 0.0
    %160 = vmatpush1.msra.mxu0 0.0
    %161 = vmatprep.subr.mxu0 0.0
    %162 = vmatpush1.msra.mxu0 0.0
    %163 = vmatprep.subr.mxu0 0.0
    %164 = vmatpush1.msra.mxu0 0.0
    %165 = vmatprep.subr.mxu0 0.0
    %166 = vmatpush1.msra.mxu0 0.0
    %167 = vmatprep.subr.mxu0 0.0
    %168 = vmatpush1.msra.mxu0 0.0
    %169 = vmatprep.subr.mxu0 0.0
    %170 = vmatpush1.msra.mxu0 0.0
    %171 = vmatprep.subr.mxu0 0.0
    %172 = vmatpush1.msra.mxu0 0.0
    %173 = vmatprep.subr.mxu0 0.0
    %174 = vmatpush1.msra.mxu0 0.0
    %175 = vmatprep.mubr.f32.mxu0 0.0
    %176 = vmatmul.mubr.f32.gmra.mrb[0].mxu0 %v109
    %v177 = vpop.f32.mrb[0].mxu0
    %v178 = vadd.f32 0.0, %v177
    %v179 = vpop.f32.mrb[0].mxu0
    %180 = vdwg.mxu0
    %vm181 = vcmask 64512
    %182 = vst.msk [vmem:[#allocation5] sm:$0xff] %vm181, %v178
    %s183 = scalar_lea.vmem [#allocation2], 16
    %v184 = vld [vmem:[%s183] sm:$0xff]
    %v185 = vld [vmem:[%s183 + $0x8] sm:$0xff]
    %186 = vmatprep.subr.mxu0 0.0
    %187 = vmatpush1.msra.mxu0 %v184
    %188 = vmatprep.subr.mxu0 0.0
    %189 = vmatpush1.msra.mxu0 %v185
    %190 = vmatprep.subr.mxu0 0.0
    %191 = vmatpush1.msra.mxu0 0.0
    %192 = vmatprep.subr.mxu0 0.0
    %193 = vmatpush1.msra.mxu0 0.0
    %194 = vmatprep.subr.mxu0 0.0
    %195 = vmatpush1.msra.mxu0 0.0
    %196 = vmatprep.subr.mxu0 0.0
    %197 = vmatpush1.msra.mxu0 0.0
    %198 = vmatprep.subr.mxu0 0.0
    %199 = vmatpush1.msra.mxu0 0.0
    %200 = vmatprep.subr.mxu0 0.0
    %201 = vmatpush1.msra.mxu0 0.0
    %202 = vmatprep.subr.mxu0 0.0
    %203 = vmatpush1.msra.mxu0 0.0
    %204 = vmatprep.subr.mxu0 0.0
    %205 = vmatpush1.msra.mxu0 0.0
    %206 = vmatprep.subr.mxu0 0.0
    %207 = vmatpush1.msra.mxu0 0.0
    %208 = vmatprep.subr.mxu0 0.0
    %209 = vmatpush1.msra.mxu0 0.0
    %210 = vmatprep.subr.mxu0 0.0
    %211 = vmatpush1.msra.mxu0 0.0
    %212 = vmatprep.subr.mxu0 0.0
    %213 = vmatpush1.msra.mxu0 0.0
    %214 = vmatprep.subr.mxu0 0.0
    %215 = vmatpush1.msra.mxu0 0.0
    %216 = vmatprep.subr.mxu0 0.0
    %217 = vmatpush1.msra.mxu0 0.0
    %218 = vmatprep.subr.mxu0 0.0
    %219 = vmatpush1.msra.mxu0 0.0
    %220 = vmatprep.subr.mxu0 0.0
    %221 = vmatpush1.msra.mxu0 0.0
    %222 = vmatprep.subr.mxu0 0.0
    %223 = vmatpush1.msra.mxu0 0.0
    %224 = vmatprep.subr.mxu0 0.0
    %225 = vmatpush1.msra.mxu0 0.0
    %226 = vmatprep.subr.mxu0 0.0
    %227 = vmatpush1.msra.mxu0 0.0
    %228 = vmatprep.subr.mxu0 0.0
    %229 = vmatpush1.msra.mxu0 0.0
    %230 = vmatprep.subr.mxu0 0.0
    %231 = vmatpush1.msra.mxu0 0.0
    %232 = vmatprep.subr.mxu0 0.0
    %233 = vmatpush1.msra.mxu0 0.0
    %234 = vmatprep.subr.mxu0 0.0
    %235 = vmatpush1.msra.mxu0 0.0
    %236 = vmatprep.subr.mxu0 0.0
    %237 = vmatpush1.msra.mxu0 0.0
    %238 = vmatprep.subr.mxu0 0.0
    %239 = vmatpush1.msra.mxu0 0.0
    %240 = vmatprep.subr.mxu0 0.0
    %241 = vmatpush1.msra.mxu0 0.0
    %242 = vmatprep.subr.mxu0 0.0
    %243 = vmatpush1.msra.mxu0 0.0
    %244 = vmatprep.subr.mxu0 0.0
    %245 = vmatpush1.msra.mxu0 0.0
    %246 = vmatprep.subr.mxu0 0.0
    %247 = vmatpush1.msra.mxu0 0.0
    %248 = vmatprep.subr.mxu0 0.0
    %249 = vmatpush1.msra.mxu0 0.0
    %250 = vmatprep.mubr.f32.mxu0 0.0
    %251 = vmatmul.mubr.f32.gmra.mrb[0].mxu0 %v36
    %v252 = vpop.f32.mrb[0].mxu0
    %v253 = vadd.f32 0.0, %v252
    %v254 = vpop.f32.mrb[0].mxu0
    %255 = vdwg.mxu0
    %v257 = vsel %vm34, %v253, 0
    %259 = vmatprep.subr.mxu0 0.0
    %260 = vmatpush1.msra.mxu0 %v30
    %261 = vmatprep.subr.mxu0 0.0
    %262 = vmatpush1.msra.mxu0 %v31
    %263 = vmatprep.subr.mxu0 0.0
    %264 = vmatpush1.msra.mxu0 0.0
    %265 = vmatprep.subr.mxu0 0.0
    %266 = vmatpush1.msra.mxu0 0.0
    %267 = vmatprep.subr.mxu0 0.0
    %268 = vmatpush1.msra.mxu0 0.0
    %269 = vmatprep.subr.mxu0 0.0
    %270 = vmatpush1.msra.mxu0 0.0
    %271 = vmatprep.subr.mxu0 0.0
    %272 = vmatpush1.msra.mxu0 0.0
    %273 = vmatprep.subr.mxu0 0.0
    %274 = vmatpush1.msra.mxu0 0.0
    %275 = vmatprep.subr.mxu0 0.0
    %276 = vmatpush1.msra.mxu0 0.0
    %277 = vmatprep.subr.mxu0 0.0
    %278 = vmatpush1.msra.mxu0 0.0
    %279 = vmatprep.subr.mxu0 0.0
    %280 = vmatpush1.msra.mxu0 0.0
    %281 = vmatprep.subr.mxu0 0.0
    %282 = vmatpush1.msra.mxu0 0.0
    %283 = vmatprep.subr.mxu0 0.0
    %284 = vmatpush1.msra.mxu0 0.0
    %285 = vmatprep.subr.mxu0 0.0
    %286 = vmatpush1.msra.mxu0 0.0
    %287 = vmatprep.subr.mxu0 0.0
    %288 = vmatpush1.msra.mxu0 0.0
    %289 = vmatprep.subr.mxu0 0.0
    %290 = vmatpush1.msra.mxu0 0.0
    %291 = vmatprep.subr.mxu0 0.0
    %292 = vmatpush1.msra.mxu0 0.0
    %293 = vmatprep.subr.mxu0 0.0
    %294 = vmatpush1.msra.mxu0 0.0
    %295 = vmatprep.subr.mxu0 0.0
    %296 = vmatpush1.msra.mxu0 0.0
    %297 = vmatprep.subr.mxu0 0.0
    %298 = vmatpush1.msra.mxu0 0.0
    %299 = vmatprep.subr.mxu0 0.0
    %300 = vmatpush1.msra.mxu0 0.0
    %301 = vmatprep.subr.mxu0 0.0
    %302 = vmatpush1.msra.mxu0 0.0
    %303 = vmatprep.subr.mxu0 0.0
    %304 = vmatpush1.msra.mxu0 0.0
    %305 = vmatprep.subr.mxu0 0.0
    %306 = vmatpush1.msra.mxu0 0.0
    %307 = vmatprep.subr.mxu0 0.0
    %308 = vmatpush1.msra.mxu0 0.0
    %309 = vmatprep.subr.mxu0 0.0
    %310 = vmatpush1.msra.mxu0 0.0
    %311 = vmatprep.subr.mxu0 0.0
    %312 = vmatpush1.msra.mxu0 0.0
    %313 = vmatprep.subr.mxu0 0.0
    %314 = vmatpush1.msra.mxu0 0.0
    %315 = vmatprep.subr.mxu0 0.0
    %316 = vmatpush1.msra.mxu0 0.0
    %317 = vmatprep.subr.mxu0 0.0
    %318 = vmatpush1.msra.mxu0 0.0
    %319 = vmatprep.subr.mxu0 0.0
    %320 = vmatpush1.msra.mxu0 0.0
    %321 = vmatprep.subr.mxu0 0.0
    %322 = vmatpush1.msra.mxu0 0.0
    %323 = vmatprep.mubr.f32.mxu0 0.0
    %324 = vmatmul.mubr.f32.gmra.mrb[0].mxu0 %v257
    %v325 = vpop.f32.mrb[0].mxu0
    %v326 = vadd.f32 0.0, %v325
    %v327 = vpop.f32.mrb[0].mxu0
    %328 = vdwg.mxu0
    %s329 = scalar_lea.vmem [#allocation5], 8
    %330 = vst.msk [vmem:[%s329] sm:$0xff] %vm181, %v326
    %s331 = scalar_lea.vmem [#allocation2], 32
    %v332 = vld [vmem:[%s331] sm:$0xff]
    %v333 = vld [vmem:[%s331 + $0x8] sm:$0xff]
    %334 = vmatprep.subr.mxu0 0.0
    %335 = vmatpush1.msra.mxu0 %v332
    %336 = vmatprep.subr.mxu0 0.0
    %337 = vmatpush1.msra.mxu0 %v333
    %338 = vmatprep.subr.mxu0 0.0
    %339 = vmatpush1.msra.mxu0 0.0
    %340 = vmatprep.subr.mxu0 0.0
    %341 = vmatpush1.msra.mxu0 0.0
    %342 = vmatprep.subr.mxu0 0.0
    %343 = vmatpush1.msra.mxu0 0.0
    %344 = vmatprep.subr.mxu0 0.0
    %345 = vmatpush1.msra.mxu0 0.0
    %346 = vmatprep.subr.mxu0 0.0
    %347 = vmatpush1.msra.mxu0 0.0
    %348 = vmatprep.subr.mxu0 0.0
    %349 = vmatpush1.msra.mxu0 0.0
    %350 = vmatprep.subr.mxu0 0.0
    %351 = vmatpush1.msra.mxu0 0.0
    %352 = vmatprep.subr.mxu0 0.0
    %353 = vmatpush1.msra.mxu0 0.0
    %354 = vmatprep.subr.mxu0 0.0
    %355 = vmatpush1.msra.mxu0 0.0
    %356 = vmatprep.subr.mxu0 0.0
    %357 = vmatpush1.msra.mxu0 0.0
    %358 = vmatprep.subr.mxu0 0.0
    %359 = vmatpush1.msra.mxu0 0.0
    %360 = vmatprep.subr.mxu0 0.0
    %361 = vmatpush1.msra.mxu0 0.0
    %362 = vmatprep.subr.mxu0 0.0
    %363 = vmatpush1.msra.mxu0 0.0
    %364 = vmatprep.subr.mxu0 0.0
    %365 = vmatpush1.msra.mxu0 0.0
    %366 = vmatprep.subr.mxu0 0.0
    %367 = vmatpush1.msra.mxu0 0.0
    %368 = vmatprep.subr.mxu0 0.0
    %369 = vmatpush1.msra.mxu0 0.0
    %370 = vmatprep.subr.mxu0 0.0
    %371 = vmatpush1.msra.mxu0 0.0
    %372 = vmatprep.subr.mxu0 0.0
    %373 = vmatpush1.msra.mxu0 0.0
    %374 = vmatprep.subr.mxu0 0.0
    %375 = vmatpush1.msra.mxu0 0.0
    %376 = vmatprep.subr.mxu0 0.0
    %377 = vmatpush1.msra.mxu0 0.0
    %378 = vmatprep.subr.mxu0 0.0
    %379 = vmatpush1.msra.mxu0 0.0
    %380 = vmatprep.subr.mxu0 0.0
    %381 = vmatpush1.msra.mxu0 0.0
    %382 = vmatprep.subr.mxu0 0.0
    %383 = vmatpush1.msra.mxu0 0.0
    %384 = vmatprep.subr.mxu0 0.0
    %385 = vmatpush1.msra.mxu0 0.0
    %386 = vmatprep.subr.mxu0 0.0
    %387 = vmatpush1.msra.mxu0 0.0
    %388 = vmatprep.subr.mxu0 0.0
    %389 = vmatpush1.msra.mxu0 0.0
    %390 = vmatprep.subr.mxu0 0.0
    %391 = vmatpush1.msra.mxu0 0.0
    %392 = vmatprep.subr.mxu0 0.0
    %393 = vmatpush1.msra.mxu0 0.0
    %394 = vmatprep.subr.mxu0 0.0
    %395 = vmatpush1.msra.mxu0 0.0
    %396 = vmatprep.subr.mxu0 0.0
    %397 = vmatpush1.msra.mxu0 0.0
    %398 = vmatprep.mubr.f32.mxu0 0.0
    %399 = vmatmul.mubr.f32.gmra.mrb[0].mxu0 %v36
    %v400 = vpop.f32.mrb[0].mxu0
    %v401 = vadd.f32 0.0, %v400
    %v402 = vpop.f32.mrb[0].mxu0
    %403 = vdwg.mxu0
    %v405 = vsel %vm34, %v401, 0
    %407 = vmatprep.subr.mxu0 0.0
    %408 = vmatpush1.msra.mxu0 %v30
    %409 = vmatprep.subr.mxu0 0.0
    %410 = vmatpush1.msra.mxu0 %v31
    %411 = vmatprep.subr.mxu0 0.0
    %412 = vmatpush1.msra.mxu0 0.0
    %413 = vmatprep.subr.mxu0 0.0
    %414 = vmatpush1.msra.mxu0 0.0
    %415 = vmatprep.subr.mxu0 0.0
    %416 = vmatpush1.msra.mxu0 0.0
    %417 = vmatprep.subr.mxu0 0.0
    %418 = vmatpush1.msra.mxu0 0.0
    %419 = vmatprep.subr.mxu0 0.0
    %420 = vmatpush1.msra.mxu0 0.0
    %421 = vmatprep.subr.mxu0 0.0
    %422 = vmatpush1.msra.mxu0 0.0
    %423 = vmatprep.subr.mxu0 0.0
    %424 = vmatpush1.msra.mxu0 0.0
    %425 = vmatprep.subr.mxu0 0.0
    %426 = vmatpush1.msra.mxu0 0.0
    %427 = vmatprep.subr.mxu0 0.0
    %428 = vmatpush1.msra.mxu0 0.0
    %429 = vmatprep.subr.mxu0 0.0
    %430 = vmatpush1.msra.mxu0 0.0
    %431 = vmatprep.subr.mxu0 0.0
    %432 = vmatpush1.msra.mxu0 0.0
    %433 = vmatprep.subr.mxu0 0.0
    %434 = vmatpush1.msra.mxu0 0.0
    %435 = vmatprep.subr.mxu0 0.0
    %436 = vmatpush1.msra.mxu0 0.0
    %437 = vmatprep.subr.mxu0 0.0
    %438 = vmatpush1.msra.mxu0 0.0
    %439 = vmatprep.subr.mxu0 0.0
    %440 = vmatpush1.msra.mxu0 0.0
    %441 = vmatprep.subr.mxu0 0.0
    %442 = vmatpush1.msra.mxu0 0.0
    %443 = vmatprep.subr.mxu0 0.0
    %444 = vmatpush1.msra.mxu0 0.0
    %445 = vmatprep.subr.mxu0 0.0
    %446 = vmatpush1.msra.mxu0 0.0
    %447 = vmatprep.subr.mxu0 0.0
    %448 = vmatpush1.msra.mxu0 0.0
    %449 = vmatprep.subr.mxu0 0.0
    %450 = vmatpush1.msra.mxu0 0.0
    %451 = vmatprep.subr.mxu0 0.0
    %452 = vmatpush1.msra.mxu0 0.0
    %453 = vmatprep.subr.mxu0 0.0
    %454 = vmatpush1.msra.mxu0 0.0
    %455 = vmatprep.subr.mxu0 0.0
    %456 = vmatpush1.msra.mxu0 0.0
    %457 = vmatprep.subr.mxu0 0.0
    %458 = vmatpush1.msra.mxu0 0.0
    %459 = vmatprep.subr.mxu0 0.0
    %460 = vmatpush1.msra.mxu0 0.0
    %461 = vmatprep.subr.mxu0 0.0
    %462 = vmatpush1.msra.mxu0 0.0
    %463 = vmatprep.subr.mxu0 0.0
    %464 = vmatpush1.msra.mxu0 0.0
    %465 = vmatprep.subr.mxu0 0.0
    %466 = vmatpush1.msra.mxu0 0.0
    %467 = vmatprep.subr.mxu0 0.0
    %468 = vmatpush1.msra.mxu0 0.0
    %469 = vmatprep.subr.mxu0 0.0
    %470 = vmatpush1.msra.mxu0 0.0
    %471 = vmatprep.mubr.f32.mxu0 0.0
    %472 = vmatmul.mubr.f32.gmra.mrb[0].mxu0 %v405
    %v473 = vpop.f32.mrb[0].mxu0
    %v474 = vadd.f32 0.0, %v473
    %v475 = vpop.f32.mrb[0].mxu0
    %476 = vdwg.mxu0
    %s477 = scalar_lea.vmem [#allocation5], 16
    %478 = vst.msk [vmem:[%s477] sm:$0xff] %vm181, %v474
    %s479 = scalar_lea.vmem [#allocation2], 48
    %v480 = vld [vmem:[%s479] sm:$0xff]
    %v481 = vld [vmem:[%s479 + $0x8] sm:$0xff]
    %482 = vmatprep.subr.mxu0 0.0
    %483 = vmatpush1.msra.mxu0 %v480
    %484 = vmatprep.subr.mxu0 0.0
    %485 = vmatpush1.msra.mxu0 %v481
    %486 = vmatprep.subr.mxu0 0.0
    %487 = vmatpush1.msra.mxu0 0.0
    %488 = vmatprep.subr.mxu0 0.0
    %489 = vmatpush1.msra.mxu0 0.0
    %490 = vmatprep.subr.mxu0 0.0
    %491 = vmatpush1.msra.mxu0 0.0
    %492 = vmatprep.subr.mxu0 0.0
    %493 = vmatpush1.msra.mxu0 0.0
    %494 = vmatprep.subr.mxu0 0.0
    %495 = vmatpush1.msra.mxu0 0.0
    %496 = vmatprep.subr.mxu0 0.0
    %497 = vmatpush1.msra.mxu0 0.0
    %498 = vmatprep.subr.mxu0 0.0
    %499 = vmatpush1.msra.mxu0 0.0
    %500 = vmatprep.subr.mxu0 0.0
    %501 = vmatpush1.msra.mxu0 0.0
    %502 = vmatprep.subr.mxu0 0.0
    %503 = vmatpush1.msra.mxu0 0.0
    %504 = vmatprep.subr.mxu0 0.0
    %505 = vmatpush1.msra.mxu0 0.0
    %506 = vmatprep.subr.mxu0 0.0
    %507 = vmatpush1.msra.mxu0 0.0
    %508 = vmatprep.subr.mxu0 0.0
    %509 = vmatpush1.msra.mxu0 0.0
    %510 = vmatprep.subr.mxu0 0.0
    %511 = vmatpush1.msra.mxu0 0.0
    %512 = vmatprep.subr.mxu0 0.0
    %513 = vmatpush1.msra.mxu0 0.0
    %514 = vmatprep.subr.mxu0 0.0
    %515 = vmatpush1.msra.mxu0 0.0
    %516 = vmatprep.subr.mxu0 0.0
    %517 = vmatpush1.msra.mxu0 0.0
    %518 = vmatprep.subr.mxu0 0.0
    %519 = vmatpush1.msra.mxu0 0.0
    %520 = vmatprep.subr.mxu0 0.0
    %521 = vmatpush1.msra.mxu0 0.0
    %522 = vmatprep.subr.mxu0 0.0
    %523 = vmatpush1.msra.mxu0 0.0
    %524 = vmatprep.subr.mxu0 0.0
    %525 = vmatpush1.msra.mxu0 0.0
    %526 = vmatprep.subr.mxu0 0.0
    %527 = vmatpush1.msra.mxu0 0.0
    %528 = vmatprep.subr.mxu0 0.0
    %529 = vmatpush1.msra.mxu0 0.0
    %530 = vmatprep.subr.mxu0 0.0
    %531 = vmatpush1.msra.mxu0 0.0
    %532 = vmatprep.subr.mxu0 0.0
    %533 = vmatpush1.msra.mxu0 0.0
    %534 = vmatprep.subr.mxu0 0.0
    %535 = vmatpush1.msra.mxu0 0.0
    %536 = vmatprep.subr.mxu0 0.0
    %537 = vmatpush1.msra.mxu0 0.0
    %538 = vmatprep.subr.mxu0 0.0
    %539 = vmatpush1.msra.mxu0 0.0
    %540 = vmatprep.subr.mxu0 0.0
    %541 = vmatpush1.msra.mxu0 0.0
    %542 = vmatprep.subr.mxu0 0.0
    %543 = vmatpush1.msra.mxu0 0.0
    %544 = vmatprep.subr.mxu0 0.0
    %545 = vmatpush1.msra.mxu0 0.0
    %546 = vmatprep.mubr.f32.mxu0 0.0
    %547 = vmatmul.mubr.f32.gmra.mrb[0].mxu0 %v36
    %v548 = vpop.f32.mrb[0].mxu0
    %v549 = vadd.f32 0.0, %v548
    %v550 = vpop.f32.mrb[0].mxu0
    %551 = vdwg.mxu0
    %v553 = vsel %vm34, %v549, 0
    %555 = vmatprep.subr.mxu0 0.0
    %556 = vmatpush1.msra.mxu0 %v30
    %557 = vmatprep.subr.mxu0 0.0
    %558 = vmatpush1.msra.mxu0 %v31
    %559 = vmatprep.subr.mxu0 0.0
    %560 = vmatpush1.msra.mxu0 0.0
    %561 = vmatprep.subr.mxu0 0.0
    %562 = vmatpush1.msra.mxu0 0.0
    %563 = vmatprep.subr.mxu0 0.0
    %564 = vmatpush1.msra.mxu0 0.0
    %565 = vmatprep.subr.mxu0 0.0
    %566 = vmatpush1.msra.mxu0 0.0
    %567 = vmatprep.subr.mxu0 0.0
    %568 = vmatpush1.msra.mxu0 0.0
    %569 = vmatprep.subr.mxu0 0.0
    %570 = vmatpush1.msra.mxu0 0.0
    %571 = vmatprep.subr.mxu0 0.0
    %572 = vmatpush1.msra.mxu0 0.0
    %573 = vmatprep.subr.mxu0 0.0
    %574 = vmatpush1.msra.mxu0 0.0
    %575 = vmatprep.subr.mxu0 0.0
    %576 = vmatpush1.msra.mxu0 0.0
    %577 = vmatprep.subr.mxu0 0.0
    %578 = vmatpush1.msra.mxu0 0.0
    %579 = vmatprep.subr.mxu0 0.0
    %580 = vmatpush1.msra.mxu0 0.0
    %581 = vmatprep.subr.mxu0 0.0
    %582 = vmatpush1.msra.mxu0 0.0
    %583 = vmatprep.subr.mxu0 0.0
    %584 = vmatpush1.msra.mxu0 0.0
    %585 = vmatprep.subr.mxu0 0.0
    %586 = vmatpush1.msra.mxu0 0.0
    %587 = vmatprep.subr.mxu0 0.0
    %588 = vmatpush1.msra.mxu0 0.0
    %589 = vmatprep.subr.mxu0 0.0
    %590 = vmatpush1.msra.mxu0 0.0
    %591 = vmatprep.subr.mxu0 0.0
    %592 = vmatpush1.msra.mxu0 0.0
    %593 = vmatprep.subr.mxu0 0.0
    %594 = vmatpush1.msra.mxu0 0.0
    %595 = vmatprep.subr.mxu0 0.0
    %596 = vmatpush1.msra.mxu0 0.0
    %597 = vmatprep.subr.mxu0 0.0
    %598 = vmatpush1.msra.mxu0 0.0
    %599 = vmatprep.subr.mxu0 0.0
    %600 = vmatpush1.msra.mxu0 0.0
    %601 = vmatprep.subr.mxu0 0.0
    %602 = vmatpush1.msra.mxu0 0.0
    %603 = vmatprep.subr.mxu0 0.0
    %604 = vmatpush1.msra.mxu0 0.0
    %605 = vmatprep.subr.mxu0 0.0
    %606 = vmatpush1.msra.mxu0 0.0
    %607 = vmatprep.subr.mxu0 0.0
    %608 = vmatpush1.msra.mxu0 0.0
    %609 = vmatprep.subr.mxu0 0.0
    %610 = vmatpush1.msra.mxu0 0.0
    %611 = vmatprep.subr.mxu0 0.0
    %612 = vmatpush1.msra.mxu0 0.0
    %613 = vmatprep.subr.mxu0 0.0
    %614 = vmatpush1.msra.mxu0 0.0
    %615 = vmatprep.subr.mxu0 0.0
    %616 = vmatpush1.msra.mxu0 0.0
    %617 = vmatprep.subr.mxu0 0.0
    %618 = vmatpush1.msra.mxu0 0.0
    %619 = vmatprep.mubr.f32.mxu0 0.0
    %620 = vmatmul.mubr.f32.gmra.mrb[0].mxu0 %v553
    %v621 = vpop.f32.mrb[0].mxu0
    %v622 = vadd.f32 0.0, %v621
    %v623 = vpop.f32.mrb[0].mxu0
    %624 = vdwg.mxu0
    %s625 = scalar_lea.vmem [#allocation5], 24
    %626 = vst.msk [vmem:[%s625] sm:$0xff] %vm181, %v622
    %s627 = scalar_lea.vmem [#allocation2], 64
    %v628 = vld [vmem:[%s627] sm:$0xff]
    %v629 = vld [vmem:[%s627 + $0x8] sm:$0xff]
    %630 = vmatprep.subr.mxu0 0.0
    %631 = vmatpush1.msra.mxu0 %v628
    %632 = vmatprep.subr.mxu0 0.0
    %633 = vmatpush1.msra.mxu0 %v629
    %634 = vmatprep.subr.mxu0 0.0
    %635 = vmatpush1.msra.mxu0 0.0
    %636 = vmatprep.subr.mxu0 0.0
    %637 = vmatpush1.msra.mxu0 0.0
    %638 = vmatprep.subr.mxu0 0.0
    %639 = vmatpush1.msra.mxu0 0.0
    %640 = vmatprep.subr.mxu0 0.0
    %641 = vmatpush1.msra.mxu0 0.0
    %642 = vmatprep.subr.mxu0 0.0
    %643 = vmatpush1.msra.mxu0 0.0
    %644 = vmatprep.subr.mxu0 0.0
    %645 = vmatpush1.msra.mxu0 0.0
    %646 = vmatprep.subr.mxu0 0.0
    %647 = vmatpush1.msra.mxu0 0.0
    %648 = vmatprep.subr.mxu0 0.0
    %649 = vmatpush1.msra.mxu0 0.0
    %650 = vmatprep.subr.mxu0 0.0
    %651 = vmatpush1.msra.mxu0 0.0
    %652 = vmatprep.subr.mxu0 0.0
    %653 = vmatpush1.msra.mxu0 0.0
    %654 = vmatprep.subr.mxu0 0.0
    %655 = vmatpush1.msra.mxu0 0.0
    %656 = vmatprep.subr.mxu0 0.0
    %657 = vmatpush1.msra.mxu0 0.0
    %658 = vmatprep.subr.mxu0 0.0
    %659 = vmatpush1.msra.mxu0 0.0
    %660 = vmatprep.subr.mxu0 0.0
    %661 = vmatpush1.msra.mxu0 0.0
    %662 = vmatprep.subr.mxu0 0.0
    %663 = vmatpush1.msra.mxu0 0.0
    %664 = vmatprep.subr.mxu0 0.0
    %665 = vmatpush1.msra.mxu0 0.0
    %666 = vmatprep.subr.mxu0 0.0
    %667 = vmatpush1.msra.mxu0 0.0
    %668 = vmatprep.subr.mxu0 0.0
    %669 = vmatpush1.msra.mxu0 0.0
    %670 = vmatprep.subr.mxu0 0.0
    %671 = vmatpush1.msra.mxu0 0.0
    %672 = vmatprep.subr.mxu0 0.0
    %673 = vmatpush1.msra.mxu0 0.0
    %674 = vmatprep.subr.mxu0 0.0
    %675 = vmatpush1.msra.mxu0 0.0
    %676 = vmatprep.subr.mxu0 0.0
    %677 = vmatpush1.msra.mxu0 0.0
    %678 = vmatprep.subr.mxu0 0.0
    %679 = vmatpush1.msra.mxu0 0.0
    %680 = vmatprep.subr.mxu0 0.0
    %681 = vmatpush1.msra.mxu0 0.0
    %682 = vmatprep.subr.mxu0 0.0
    %683 = vmatpush1.msra.mxu0 0.0
    %684 = vmatprep.subr.mxu0 0.0
    %685 = vmatpush1.msra.mxu0 0.0
    %686 = vmatprep.subr.mxu0 0.0
    %687 = vmatpush1.msra.mxu0 0.0
    %688 = vmatprep.subr.mxu0 0.0
    %689 = vmatpush1.msra.mxu0 0.0
    %690 = vmatprep.subr.mxu0 0.0
    %691 = vmatpush1.msra.mxu0 0.0
    %692 = vmatprep.subr.mxu0 0.0
    %693 = vmatpush1.msra.mxu0 0.0
    %694 = vmatprep.mubr.f32.mxu0 0.0
    %695 = vmatmul.mubr.f32.gmra.mrb[0].mxu0 %v36
    %v696 = vpop.f32.mrb[0].mxu0
    %v697 = vadd.f32 0.0, %v696
    %v698 = vpop.f32.mrb[0].mxu0
    %699 = vdwg.mxu0
    %v701 = vsel %vm34, %v697, 0
    %703 = vmatprep.subr.mxu0 0.0
    %704 = vmatpush1.msra.mxu0 %v30
    %705 = vmatprep.subr.mxu0 0.0
    %706 = vmatpush1.msra.mxu0 %v31
    %707 = vmatprep.subr.mxu0 0.0
    %708 = vmatpush1.msra.mxu0 0.0
    %709 = vmatprep.subr.mxu0 0.0
    %710 = vmatpush1.msra.mxu0 0.0
    %711 = vmatprep.subr.mxu0 0.0
    %712 = vmatpush1.msra.mxu0 0.0
    %713 = vmatprep.subr.mxu0 0.0
    %714 = vmatpush1.msra.mxu0 0.0
    %715 = vmatprep.subr.mxu0 0.0
    %716 = vmatpush1.msra.mxu0 0.0
    %717 = vmatprep.subr.mxu0 0.0
    %718 = vmatpush1.msra.mxu0 0.0
    %719 = vmatprep.subr.mxu0 0.0
    %720 = vmatpush1.msra.mxu0 0.0
    %721 = vmatprep.subr.mxu0 0.0
    %722 = vmatpush1.msra.mxu0 0.0
    %723 = vmatprep.subr.mxu0 0.0
    %724 = vmatpush1.msra.mxu0 0.0
    %725 = vmatprep.subr.mxu0 0.0
    %726 = vmatpush1.msra.mxu0 0.0
    %727 = vmatprep.subr.mxu0 0.0
    %728 = vmatpush1.msra.mxu0 0.0
    %729 = vmatprep.subr.mxu0 0.0
    %730 = vmatpush1.msra.mxu0 0.0
    %731 = vmatprep.subr.mxu0 0.0
    %732 = vmatpush1.msra.mxu0 0.0
    %733 = vmatprep.subr.mxu0 0.0
    %734 = vmatpush1.msra.mxu0 0.0
    %735 = vmatprep.subr.mxu0 0.0
    %736 = vmatpush1.msra.mxu0 0.0
    %737 = vmatprep.subr.mxu0 0.0
    %738 = vmatpush1.msra.mxu0 0.0
    %739 = vmatprep.subr.mxu0 0.0
    %740 = vmatpush1.msra.mxu0 0.0
    %741 = vmatprep.subr.mxu0 0.0
    %742 = vmatpush1.msra.mxu0 0.0
    %743 = vmatprep.subr.mxu0 0.0
    %744 = vmatpush1.msra.mxu0 0.0
    %745 = vmatprep.subr.mxu0 0.0
    %746 = vmatpush1.msra.mxu0 0.0
    %747 = vmatprep.subr.mxu0 0.0
    %748 = vmatpush1.msra.mxu0 0.0
    %749 = vmatprep.subr.mxu0 0.0
    %750 = vmatpush1.msra.mxu0 0.0
    %751 = vmatprep.subr.mxu0 0.0
    %752 = vmatpush1.msra.mxu0 0.0
    %753 = vmatprep.subr.mxu0 0.0
    %754 = vmatpush1.msra.mxu0 0.0
    %755 = vmatprep.subr.mxu0 0.0
    %756 = vmatpush1.msra.mxu0 0.0
    %757 = vmatprep.subr.mxu0 0.0
    %758 = vmatpush1.msra.mxu0 0.0
    %759 = vmatprep.subr.mxu0 0.0
    %760 = vmatpush1.msra.mxu0 0.0
    %761 = vmatprep.subr.mxu0 0.0
    %762 = vmatpush1.msra.mxu0 0.0
    %763 = vmatprep.subr.mxu0 0.0
    %764 = vmatpush1.msra.mxu0 0.0
    %765 = vmatprep.subr.mxu0 0.0
    %766 = vmatpush1.msra.mxu0 0.0
    %767 = vmatprep.mubr.f32.mxu0 0.0
    %768 = vmatmul.mubr.f32.gmra.mrb[0].mxu0 %v701
    %v769 = vpop.f32.mrb[0].mxu0
    %v770 = vadd.f32 0.0, %v769
    %v771 = vpop.f32.mrb[0].mxu0
    %772 = vdwg.mxu0
    %s773 = scalar_lea.vmem [#allocation5], 32
    %774 = vst.msk [vmem:[%s773] sm:$0xff] %vm181, %v770
    %s775 = scalar_lea.vmem [#allocation2], 80
    %v776 = vld [vmem:[%s775] sm:$0xff]
    %v777 = vld [vmem:[%s775 + $0x8] sm:$0xff]
    %778 = vmatprep.subr.mxu0 0.0
    %779 = vmatpush1.msra.mxu0 %v776
    %780 = vmatprep.subr.mxu0 0.0
    %781 = vmatpush1.msra.mxu0 %v777
    %782 = vmatprep.subr.mxu0 0.0
    %783 = vmatpush1.msra.mxu0 0.0
    %784 = vmatprep.subr.mxu0 0.0
    %785 = vmatpush1.msra.mxu0 0.0
    %786 = vmatprep.subr.mxu0 0.0
    %787 = vmatpush1.msra.mxu0 0.0
    %788 = vmatprep.subr.mxu0 0.0
    %789 = vmatpush1.msra.mxu0 0.0
    %790 = vmatprep.subr.mxu0 0.0
    %791 = vmatpush1.msra.mxu0 0.0
    %792 = vmatprep.subr.mxu0 0.0
    %793 = vmatpush1.msra.mxu0 0.0
    %794 = vmatprep.subr.mxu0 0.0
    %795 = vmatpush1.msra.mxu0 0.0
    %796 = vmatprep.subr.mxu0 0.0
    %797 = vmatpush1.msra.mxu0 0.0
    %798 = vmatprep.subr.mxu0 0.0
    %799 = vmatpush1.msra.mxu0 0.0
    %800 = vmatprep.subr.mxu0 0.0
    %801 = vmatpush1.msra.mxu0 0.0
    %802 = vmatprep.subr.mxu0 0.0
    %803 = vmatpush1.msra.mxu0 0.0
    %804 = vmatprep.subr.mxu0 0.0
    %805 = vmatpush1.msra.mxu0 0.0
    %806 = vmatprep.subr.mxu0 0.0
    %807 = vmatpush1.msra.mxu0 0.0
    %808 = vmatprep.subr.mxu0 0.0
    %809 = vmatpush1.msra.mxu0 0.0
    %810 = vmatprep.subr.mxu0 0.0
    %811 = vmatpush1.msra.mxu0 0.0
    %812 = vmatprep.subr.mxu0 0.0
    %813 = vmatpush1.msra.mxu0 0.0
    %814 = vmatprep.subr.mxu0 0.0
    %815 = vmatpush1.msra.mxu0 0.0
    %816 = vmatprep.subr.mxu0 0.0
    %817 = vmatpush1.msra.mxu0 0.0
    %818 = vmatprep.subr.mxu0 0.0
    %819 = vmatpush1.msra.mxu0 0.0
    %820 = vmatprep.subr.mxu0 0.0
    %821 = vmatpush1.msra.mxu0 0.0
    %822 = vmatprep.subr.mxu0 0.0
    %823 = vmatpush1.msra.mxu0 0.0
    %824 = vmatprep.subr.mxu0 0.0
    %825 = vmatpush1.msra.mxu0 0.0
    %826 = vmatprep.subr.mxu0 0.0
    %827 = vmatpush1.msra.mxu0 0.0
    %828 = vmatprep.subr.mxu0 0.0
    %829 = vmatpush1.msra.mxu0 0.0
    %830 = vmatprep.subr.mxu0 0.0
    %831 = vmatpush1.msra.mxu0 0.0
    %832 = vmatprep.subr.mxu0 0.0
    %833 = vmatpush1.msra.mxu0 0.0
    %834 = vmatprep.subr.mxu0 0.0
    %835 = vmatpush1.msra.mxu0 0.0
    %836 = vmatprep.subr.mxu0 0.0
    %837 = vmatpush1.msra.mxu0 0.0
    %838 = vmatprep.subr.mxu0 0.0
    %839 = vmatpush1.msra.mxu0 0.0
    %840 = vmatprep.subr.mxu0 0.0
    %841 = vmatpush1.msra.mxu0 0.0
    %842 = vmatprep.mubr.f32.mxu0 0.0
    %843 = vmatmul.mubr.f32.gmra.mrb[0].mxu0 %v36
    %v844 = vpop.f32.mrb[0].mxu0
    %v845 = vadd.f32 0.0, %v844
    %v846 = vpop.f32.mrb[0].mxu0
    %847 = vdwg.mxu0
    %v849 = vsel %vm34, %v845, 0
    %851 = vmatprep.subr.mxu0 0.0
    %852 = vmatpush1.msra.mxu0 %v30
    %853 = vmatprep.subr.mxu0 0.0
    %854 = vmatpush1.msra.mxu0 %v31
    %855 = vmatprep.subr.mxu0 0.0
    %856 = vmatpush1.msra.mxu0 0.0
    %857 = vmatprep.subr.mxu0 0.0
    %858 = vmatpush1.msra.mxu0 0.0
    %859 = vmatprep.subr.mxu0 0.0
    %860 = vmatpush1.msra.mxu0 0.0
    %861 = vmatprep.subr.mxu0 0.0
    %862 = vmatpush1.msra.mxu0 0.0
    %863 = vmatprep.subr.mxu0 0.0
    %864 = vmatpush1.msra.mxu0 0.0
    %865 = vmatprep.subr.mxu0 0.0
    %866 = vmatpush1.msra.mxu0 0.0
    %867 = vmatprep.subr.mxu0 0.0
    %868 = vmatpush1.msra.mxu0 0.0
    %869 = vmatprep.subr.mxu0 0.0
    %870 = vmatpush1.msra.mxu0 0.0
    %871 = vmatprep.subr.mxu0 0.0
    %872 = vmatpush1.msra.mxu0 0.0
    %873 = vmatprep.subr.mxu0 0.0
    %874 = vmatpush1.msra.mxu0 0.0
    %875 = vmatprep.subr.mxu0 0.0
    %876 = vmatpush1.msra.mxu0 0.0
    %877 = vmatprep.subr.mxu0 0.0
    %878 = vmatpush1.msra.mxu0 0.0
    %879 = vmatprep.subr.mxu0 0.0
    %880 = vmatpush1.msra.mxu0 0.0
    %881 = vmatprep.subr.mxu0 0.0
    %882 = vmatpush1.msra.mxu0 0.0
    %883 = vmatprep.subr.mxu0 0.0
    %884 = vmatpush1.msra.mxu0 0.0
    %885 = vmatprep.subr.mxu0 0.0
    %886 = vmatpush1.msra.mxu0 0.0
    %887 = vmatprep.subr.mxu0 0.0
    %888 = vmatpush1.msra.mxu0 0.0
    %889 = vmatprep.subr.mxu0 0.0
    %890 = vmatpush1.msra.mxu0 0.0
    %891 = vmatprep.subr.mxu0 0.0
    %892 = vmatpush1.msra.mxu0 0.0
    %893 = vmatprep.subr.mxu0 0.0
    %894 = vmatpush1.msra.mxu0 0.0
    %895 = vmatprep.subr.mxu0 0.0
    %896 = vmatpush1.msra.mxu0 0.0
    %897 = vmatprep.subr.mxu0 0.0
    %898 = vmatpush1.msra.mxu0 0.0
    %899 = vmatprep.subr.mxu0 0.0
    %900 = vmatpush1.msra.mxu0 0.0
    %901 = vmatprep.subr.mxu0 0.0
    %902 = vmatpush1.msra.mxu0 0.0
    %903 = vmatprep.subr.mxu0 0.0
    %904 = vmatpush1.msra.mxu0 0.0
    %905 = vmatprep.subr.mxu0 0.0
    %906 = vmatpush1.msra.mxu0 0.0
    %907 = vmatprep.subr.mxu0 0.0
    %908 = vmatpush1.msra.mxu0 0.0
    %909 = vmatprep.subr.mxu0 0.0
    %910 = vmatpush1.msra.mxu0 0.0
    %911 = vmatprep.subr.mxu0 0.0
    %912 = vmatpush1.msra.mxu0 0.0
    %913 = vmatprep.subr.mxu0 0.0
    %914 = vmatpush1.msra.mxu0 0.0
    %915 = vmatprep.mubr.f32.mxu0 0.0
    %916 = vmatmul.mubr.f32.gmra.mrb[0].mxu0 %v849
    %v917 = vpop.f32.mrb[0].mxu0
    %v918 = vadd.f32 0.0, %v917
    %v919 = vpop.f32.mrb[0].mxu0
    %920 = vdwg.mxu0
    %s921 = scalar_lea.vmem [#allocation5], 40
    %922 = vst.msk [vmem:[%s921] sm:$0xff] %vm181, %v918
    %s923 = scalar_lea.vmem [#allocation2], 96
    %v924 = vld [vmem:[%s923] sm:$0xff]
    %v925 = vld [vmem:[%s923 + $0x8] sm:$0xff]
    %926 = vmatprep.subr.mxu0 0.0
    %927 = vmatpush1.msra.mxu0 %v924
    %928 = vmatprep.subr.mxu0 0.0
    %929 = vmatpush1.msra.mxu0 %v925
    %930 = vmatprep.subr.mxu0 0.0
    %931 = vmatpush1.msra.mxu0 0.0
    %932 = vmatprep.subr.mxu0 0.0
    %933 = vmatpush1.msra.mxu0 0.0
    %934 = vmatprep.subr.mxu0 0.0
    %935 = vmatpush1.msra.mxu0 0.0
    %936 = vmatprep.subr.mxu0 0.0
    %937 = vmatpush1.msra.mxu0 0.0
    %938 = vmatprep.subr.mxu0 0.0
    %939 = vmatpush1.msra.mxu0 0.0
    %940 = vmatprep.subr.mxu0 0.0
    %941 = vmatpush1.msra.mxu0 0.0
    %942 = vmatprep.subr.mxu0 0.0
    %943 = vmatpush1.msra.mxu0 0.0
    %944 = vmatprep.subr.mxu0 0.0
    %945 = vmatpush1.msra.mxu0 0.0
    %946 = vmatprep.subr.mxu0 0.0
    %947 = vmatpush1.msra.mxu0 0.0
    %948 = vmatprep.subr.mxu0 0.0
    %949 = vmatpush1.msra.mxu0 0.0
    %950 = vmatprep.subr.mxu0 0.0
    %951 = vmatpush1.msra.mxu0 0.0
    %952 = vmatprep.subr.mxu0 0.0
    %953 = vmatpush1.msra.mxu0 0.0
    %954 = vmatprep.subr.mxu0 0.0
    %955 = vmatpush1.msra.mxu0 0.0
    %956 = vmatprep.subr.mxu0 0.0
    %957 = vmatpush1.msra.mxu0 0.0
    %958 = vmatprep.subr.mxu0 0.0
    %959 = vmatpush1.msra.mxu0 0.0
    %960 = vmatprep.subr.mxu0 0.0
    %961 = vmatpush1.msra.mxu0 0.0
    %962 = vmatprep.subr.mxu0 0.0
    %963 = vmatpush1.msra.mxu0 0.0
    %964 = vmatprep.subr.mxu0 0.0
    %965 = vmatpush1.msra.mxu0 0.0
    %966 = vmatprep.subr.mxu0 0.0
    %967 = vmatpush1.msra.mxu0 0.0
    %968 = vmatprep.subr.mxu0 0.0
    %969 = vmatpush1.msra.mxu0 0.0
    %970 = vmatprep.subr.mxu0 0.0
    %971 = vmatpush1.msra.mxu0 0.0
    %972 = vmatprep.subr.mxu0 0.0
    %973 = vmatpush1.msra.mxu0 0.0
    %974 = vmatprep.subr.mxu0 0.0
    %975 = vmatpush1.msra.mxu0 0.0
    %976 = vmatprep.subr.mxu0 0.0
    %977 = vmatpush1.msra.mxu0 0.0
    %978 = vmatprep.subr.mxu0 0.0
    %979 = vmatpush1.msra.mxu0 0.0
    %980 = vmatprep.subr.mxu0 0.0
    %981 = vmatpush1.msra.mxu0 0.0
    %982 = vmatprep.subr.mxu0 0.0
    %983 = vmatpush1.msra.mxu0 0.0
    %984 = vmatprep.subr.mxu0 0.0
    %985 = vmatpush1.msra.mxu0 0.0
    %986 = vmatprep.subr.mxu0 0.0
    %987 = vmatpush1.msra.mxu0 0.0
    %988 = vmatprep.subr.mxu0 0.0
    %989 = vmatpush1.msra.mxu0 0.0
    %990 = vmatprep.mubr.f32.mxu0 0.0
    %991 = vmatmul.mubr.f32.gmra.mrb[0].mxu0 %v36
    %v992 = vpop.f32.mrb[0].mxu0
    %v993 = vadd.f32 0.0, %v992
    %v994 = vpop.f32.mrb[0].mxu0
    %995 = vdwg.mxu0
    %v997 = vsel %vm34, %v993, 0
    %999 = vmatprep.subr.mxu0 0.0
    %1000 = vmatpush1.msra.mxu0 %v30
    %1001 = vmatprep.subr.mxu0 0.0
    %1002 = vmatpush1.msra.mxu0 %v31
    %1003 = vmatprep.subr.mxu0 0.0
    %1004 = vmatpush1.msra.mxu0 0.0
    %1005 = vmatprep.subr.mxu0 0.0
    %1006 = vmatpush1.msra.mxu0 0.0
    %1007 = vmatprep.subr.mxu0 0.0
    %1008 = vmatpush1.msra.mxu0 0.0
    %1009 = vmatprep.subr.mxu0 0.0
    %1010 = vmatpush1.msra.mxu0 0.0
    %1011 = vmatprep.subr.mxu0 0.0
    %1012 = vmatpush1.msra.mxu0 0.0
    %1013 = vmatprep.subr.mxu0 0.0
    %1014 = vmatpush1.msra.mxu0 0.0
    %1015 = vmatprep.subr.mxu0 0.0
    %1016 = vmatpush1.msra.mxu0 0.0
    %1017 = vmatprep.subr.mxu0 0.0
    %1018 = vmatpush1.msra.mxu0 0.0
    %1019 = vmatprep.subr.mxu0 0.0
    %1020 = vmatpush1.msra.mxu0 0.0
    %1021 = vmatprep.subr.mxu0 0.0
    %1022 = vmatpush1.msra.mxu0 0.0
    %1023 = vmatprep.subr.mxu0 0.0
    %1024 = vmatpush1.msra.mxu0 0.0
    %1025 = vmatprep.subr.mxu0 0.0
    %1026 = vmatpush1.msra.mxu0 0.0
    %1027 = vmatprep.subr.mxu0 0.0
    %1028 = vmatpush1.msra.mxu0 0.0
    %1029 = vmatprep.subr.mxu0 0.0
    %1030 = vmatpush1.msra.mxu0 0.0
    %1031 = vmatprep.subr.mxu0 0.0
    %1032 = vmatpush1.msra.mxu0 0.0
    %1033 = vmatprep.subr.mxu0 0.0
    %1034 = vmatpush1.msra.mxu0 0.0
    %1035 = vmatprep.subr.mxu0 0.0
    %1036 = vmatpush1.msra.mxu0 0.0
    %1037 = vmatprep.subr.mxu0 0.0
    %1038 = vmatpush1.msra.mxu0 0.0
    %1039 = vmatprep.subr.mxu0 0.0
    %1040 = vmatpush1.msra.mxu0 0.0
    %1041 = vmatprep.subr.mxu0 0.0
    %1042 = vmatpush1.msra.mxu0 0.0
    %1043 = vmatprep.subr.mxu0 0.0
    %1044 = vmatpush1.msra.mxu0 0.0
    %1045 = vmatprep.subr.mxu0 0.0
    %1046 = vmatpush1.msra.mxu0 0.0
    %1047 = vmatprep.subr.mxu0 0.0
    %1048 = vmatpush1.msra.mxu0 0.0
    %1049 = vmatprep.subr.mxu0 0.0
    %1050 = vmatpush1.msra.mxu0 0.0
    %1051 = vmatprep.subr.mxu0 0.0
    %1052 = vmatpush1.msra.mxu0 0.0
    %1053 = vmatprep.subr.mxu0 0.0
    %1054 = vmatpush1.msra.mxu0 0.0
    %1055 = vmatprep.subr.mxu0 0.0
    %1056 = vmatpush1.msra.mxu0 0.0
    %1057 = vmatprep.subr.mxu0 0.0
    %1058 = vmatpush1.msra.mxu0 0.0
    %1059 = vmatprep.subr.mxu0 0.0
    %1060 = vmatpush1.msra.mxu0 0.0
    %1061 = vmatprep.subr.mxu0 0.0
    %1062 = vmatpush1.msra.mxu0 0.0
    %1063 = vmatprep.mubr.f32.mxu0 0.0
    %1064 = vmatmul.mubr.f32.gmra.mrb[0].mxu0 %v997
    %v1065 = vpop.f32.mrb[0].mxu0
    %v1066 = vadd.f32 0.0, %v1065
    %v1067 = vpop.f32.mrb[0].mxu0
    %1068 = vdwg.mxu0
    %s1069 = scalar_lea.vmem [#allocation5], 48
    %1070 = vst.msk [vmem:[%s1069] sm:$0xff] %vm181, %v1066
    %s1071 = scalar_lea.vmem [#allocation2], 112
    %v1072 = vld [vmem:[%s1071] sm:$0xff]
    %v1073 = vld [vmem:[%s1071 + $0x8] sm:$0xff]
    %1074 = vmatprep.subr.mxu0 0.0
    %1075 = vmatpush1.msra.mxu0 %v1072
    %1076 = vmatprep.subr.mxu0 0.0
    %1077 = vmatpush1.msra.mxu0 %v1073
    %1078 = vmatprep.subr.mxu0 0.0
    %1079 = vmatpush1.msra.mxu0 0.0
    %1080 = vmatprep.subr.mxu0 0.0
    %1081 = vmatpush1.msra.mxu0 0.0
    %1082 = vmatprep.subr.mxu0 0.0
    %1083 = vmatpush1.msra.mxu0 0.0
    %1084 = vmatprep.subr.mxu0 0.0
    %1085 = vmatpush1.msra.mxu0 0.0
    %1086 = vmatprep.subr.mxu0 0.0
    %1087 = vmatpush1.msra.mxu0 0.0
    %1088 = vmatprep.subr.mxu0 0.0
    %1089 = vmatpush1.msra.mxu0 0.0
    %1090 = vmatprep.subr.mxu0 0.0
    %1091 = vmatpush1.msra.mxu0 0.0
    %1092 = vmatprep.subr.mxu0 0.0
    %1093 = vmatpush1.msra.mxu0 0.0
    %1094 = vmatprep.subr.mxu0 0.0
    %1095 = vmatpush1.msra.mxu0 0.0
    %1096 = vmatprep.subr.mxu0 0.0
    %1097 = vmatpush1.msra.mxu0 0.0
    %1098 = vmatprep.subr.mxu0 0.0
    %1099 = vmatpush1.msra.mxu0 0.0
    %1100 = vmatprep.subr.mxu0 0.0
    %1101 = vmatpush1.msra.mxu0 0.0
    %1102 = vmatprep.subr.mxu0 0.0
    %1103 = vmatpush1.msra.mxu0 0.0
    %1104 = vmatprep.subr.mxu0 0.0
    %1105 = vmatpush1.msra.mxu0 0.0
    %1106 = vmatprep.subr.mxu0 0.0
    %1107 = vmatpush1.msra.mxu0 0.0
    %1108 = vmatprep.subr.mxu0 0.0
    %1109 = vmatpush1.msra.mxu0 0.0
    %1110 = vmatprep.subr.mxu0 0.0
    %1111 = vmatpush1.msra.mxu0 0.0
    %1112 = vmatprep.subr.mxu0 0.0
    %1113 = vmatpush1.msra.mxu0 0.0
    %1114 = vmatprep.subr.mxu0 0.0
    %1115 = vmatpush1.msra.mxu0 0.0
    %1116 = vmatprep.subr.mxu0 0.0
    %1117 = vmatpush1.msra.mxu0 0.0
    %1118 = vmatprep.subr.mxu0 0.0
    %1119 = vmatpush1.msra.mxu0 0.0
    %1120 = vmatprep.subr.mxu0 0.0
    %1121 = vmatpush1.msra.mxu0 0.0
    %1122 = vmatprep.subr.mxu0 0.0
    %1123 = vmatpush1.msra.mxu0 0.0
    %1124 = vmatprep.subr.mxu0 0.0
    %1125 = vmatpush1.msra.mxu0 0.0
    %1126 = vmatprep.subr.mxu0 0.0
    %1127 = vmatpush1.msra.mxu0 0.0
    %1128 = vmatprep.subr.mxu0 0.0
    %1129 = vmatpush1.msra.mxu0 0.0
    %1130 = vmatprep.subr.mxu0 0.0
    %1131 = vmatpush1.msra.mxu0 0.0
    %1132 = vmatprep.subr.mxu0 0.0
    %1133 = vmatpush1.msra.mxu0 0.0
    %1134 = vmatprep.subr.mxu0 0.0
    %1135 = vmatpush1.msra.mxu0 0.0
    %1136 = vmatprep.subr.mxu0 0.0
    %1137 = vmatpush1.msra.mxu0 0.0
    %1138 = vmatprep.mubr.f32.mxu0 0.0
    %1139 = vmatmul.mubr.f32.gmra.mrb[0].mxu0 %v36
    %v1140 = vpop.f32.mrb[0].mxu0
    %v1141 = vadd.f32 0.0, %v1140
    %v1142 = vpop.f32.mrb[0].mxu0
    %1143 = vdwg.mxu0
    %v1145 = vsel %vm34, %v1141, 0
    %1147 = vmatprep.subr.mxu0 0.0
    %1148 = vmatpush1.msra.mxu0 %v30
    %1149 = vmatprep.subr.mxu0 0.0
    %1150 = vmatpush1.msra.mxu0 %v31
    %1151 = vmatprep.subr.mxu0 0.0
    %1152 = vmatpush1.msra.mxu0 0.0
    %1153 = vmatprep.subr.mxu0 0.0
    %1154 = vmatpush1.msra.mxu0 0.0
    %1155 = vmatprep.subr.mxu0 0.0
    %1156 = vmatpush1.msra.mxu0 0.0
    %1157 = vmatprep.subr.mxu0 0.0
    %1158 = vmatpush1.msra.mxu0 0.0
    %1159 = vmatprep.subr.mxu0 0.0
    %1160 = vmatpush1.msra.mxu0 0.0
    %1161 = vmatprep.subr.mxu0 0.0
    %1162 = vmatpush1.msra.mxu0 0.0
    %1163 = vmatprep.subr.mxu0 0.0
    %1164 = vmatpush1.msra.mxu0 0.0
    %1165 = vmatprep.subr.mxu0 0.0
    %1166 = vmatpush1.msra.mxu0 0.0
    %1167 = vmatprep.subr.mxu0 0.0
    %1168 = vmatpush1.msra.mxu0 0.0
    %1169 = vmatprep.subr.mxu0 0.0
    %1170 = vmatpush1.msra.mxu0 0.0
    %1171 = vmatprep.subr.mxu0 0.0
    %1172 = vmatpush1.msra.mxu0 0.0
    %1173 = vmatprep.subr.mxu0 0.0
    %1174 = vmatpush1.msra.mxu0 0.0
    %1175 = vmatprep.subr.mxu0 0.0
    %1176 = vmatpush1.msra.mxu0 0.0
    %1177 = vmatprep.subr.mxu0 0.0
    %1178 = vmatpush1.msra.mxu0 0.0
    %1179 = vmatprep.subr.mxu0 0.0
    %1180 = vmatpush1.msra.mxu0 0.0
    %1181 = vmatprep.subr.mxu0 0.0
    %1182 = vmatpush1.msra.mxu0 0.0
    %1183 = vmatprep.subr.mxu0 0.0
    %1184 = vmatpush1.msra.mxu0 0.0
    %1185 = vmatprep.subr.mxu0 0.0
    %1186 = vmatpush1.msra.mxu0 0.0
    %1187 = vmatprep.subr.mxu0 0.0
    %1188 = vmatpush1.msra.mxu0 0.0
    %1189 = vmatprep.subr.mxu0 0.0
    %1190 = vmatpush1.msra.mxu0 0.0
    %1191 = vmatprep.subr.mxu0 0.0
    %1192 = vmatpush1.msra.mxu0 0.0
    %1193 = vmatprep.subr.mxu0 0.0
    %1194 = vmatpush1.msra.mxu0 0.0
    %1195 = vmatprep.subr.mxu0 0.0
    %1196 = vmatpush1.msra.mxu0 0.0
    %1197 = vmatprep.subr.mxu0 0.0
    %1198 = vmatpush1.msra.mxu0 0.0
    %1199 = vmatprep.subr.mxu0 0.0
    %1200 = vmatpush1.msra.mxu0 0.0
    %1201 = vmatprep.subr.mxu0 0.0
    %1202 = vmatpush1.msra.mxu0 0.0
    %1203 = vmatprep.subr.mxu0 0.0
    %1204 = vmatpush1.msra.mxu0 0.0
    %1205 = vmatprep.subr.mxu0 0.0
    %1206 = vmatpush1.msra.mxu0 0.0
    %1207 = vmatprep.subr.mxu0 0.0
    %1208 = vmatpush1.msra.mxu0 0.0
    %1209 = vmatprep.subr.mxu0 0.0
    %1210 = vmatpush1.msra.mxu0 0.0
    %1211 = vmatprep.mubr.f32.mxu0 0.0
    %1212 = vmatmul.mubr.f32.gmra.mrb[0].mxu0 %v1145
    %v1213 = vpop.f32.mrb[0].mxu0
    %v1214 = vadd.f32 0.0, %v1213
    %v1215 = vpop.f32.mrb[0].mxu0
    %1216 = vdwg.mxu0
    %s1217 = scalar_lea.vmem [#allocation5], 56
    %1218 = vst.msk [vmem:[%s1217] sm:$0xff] %vm181, %v1214
    // Predicated region
    $region18: #{tpu_custom_call.1} parent=1 // pred_check
      _
    $region19: #{tpu_custom_call.1} parent=1 // pred_check_branch
      %1220 = sbr.rel (0) target = $region21
    $region20: #{tpu_custom_call.1} parent=1 // pred_region
      %s1222 = ssub.s32 1024, 1024
      %1223 = vsyncadd [#allocation4], %s1222
      %s1224 = sshll.u32 [#allocation5], 4
      %s1225 = int_to_ptr.vmem [resolvable:$true] %s1224
      %1230 = dma.vmem_to_hbm [thread:$0]  %s1225, 1024, %s3, [#allocation4], 128, 128, 8
    $region21: #{tpu_custom_call.1} parent=1 // pred_fallthru
      _
    // Predicated region
    $region22: #{tpu_custom_call.1} parent=1 // pred_check
      _
    $region23: #{tpu_custom_call.1} parent=1 // pred_check_branch
      %1232 = sbr.rel (0) target = $region25
    $region24: #{tpu_custom_call.1} parent=1 // pred_region
      %1233 = dma.done [#allocation4], 1024
    $region25: #{tpu_custom_call.1} parent=1 // pred_fallthru
      _
    %1234 = vsyncpa [#allocation3], 1
    %1235 = vsyncpa [#allocation4], 1

</llo_original>
